<compile_context>
chip_gen: v6e
topology: v6e:2x2x1
jax: 0.10.0
libtpu: 0.0.40
codegen_flags: <defaults>
</compile_context>

<pallas_src>
import functools

import jax
import jax.numpy as jnp
from jax import lax
from jax.experimental import pallas as pl
from jax.experimental.pallas import tpu as pltpu


def _pick_tile(dim, candidates):
    """Largest preferred tile that divides `dim`; fall back to the full dim."""
    for c in candidates:
        if dim % c == 0:
            return c
    return dim


# ---------------------------------------------------------------------------
# Tiled dense layers: o = x @ W (+ b).  bf16 MXU operands, f32 accumulator,
# K-reduction innermost ("arbitrary"), M/N axes "parallel".
# ---------------------------------------------------------------------------
def _matmul_kernel(x_ref, w_ref, o_ref, acc_ref):
    @pl.when(pl.program_id(2) == 0)
    def _():
        acc_ref[...] = jnp.zeros_like(acc_ref)

    acc_ref[...] += jnp.dot(x_ref[...], w_ref[...],
                            preferred_element_type=jnp.float32)

    @pl.when(pl.program_id(2) == pl.num_programs(2) - 1)
    def _():
        o_ref[...] = acc_ref[...].astype(o_ref.dtype)


def _matmul_bias_kernel(x_ref, w_ref, b_ref, o_ref, acc_ref):
    @pl.when(pl.program_id(2) == 0)
    def _():
        acc_ref[...] = jnp.zeros_like(acc_ref)

    acc_ref[...] += jnp.dot(x_ref[...], w_ref[...],
                            preferred_element_type=jnp.float32)

    @pl.when(pl.program_id(2) == pl.num_programs(2) - 1)
    def _():
        o_ref[...] = (acc_ref[...]
                      + b_ref[...].astype(jnp.float32)).astype(o_ref.dtype)


def linear(x2d, w, b=None, out_dtype=None):
    """o = x2d @ w (+ b).  w is (Cin, Cout) (ideally bf16); b is (Cout,) f32 or None."""
    M, Cin = x2d.shape
    Cout = w.shape[1]
    out_dtype = out_dtype if out_dtype is not None else x2d.dtype

    tm = _pick_tile(M, (512, 256, 128))
    tn = _pick_tile(Cout, (256, 128))
    tk = _pick_tile(Cin, (512, 256, 128))
    grid = (M // tm, Cout // tn, Cin // tk)

    in_specs = [pl.BlockSpec((tm, tk), lambda i, j, k: (i, k)),
                pl.BlockSpec((tk, tn), lambda i, j, k: (k, j))]
    args = [x2d, w]
    kernel = _matmul_kernel
    if b is not None:
        in_specs.append(pl.BlockSpec((1, tn), lambda i, j, k: (0, j)))
        args.append(b.reshape(1, Cout).astype(jnp.float32))
        kernel = _matmul_bias_kernel

    return pl.pallas_call(
        kernel,
        out_shape=jax.ShapeDtypeStruct((M, Cout), out_dtype),
        grid=grid,
        in_specs=in_specs,
        out_specs=pl.BlockSpec((tm, tn), lambda i, j, k: (i, j)),
        scratch_shapes=[pltpu.VMEM((tm, tn), jnp.float32)],
        compiler_params=pltpu.CompilerParams(
            dimension_semantics=("parallel", "parallel", "arbitrary")),
    )(*args)


# ---------------------------------------------------------------------------
# Flash-style multi-head attention, all heads handled per grid step so the
# output tile is a lane-dense (tq, C) block.
# Grid: (B, q-tiles, kv-tiles); q/k/v read straight out of the (B,N,3,H,hd) view.
# ---------------------------------------------------------------------------
def _flash_attn_kernel(q_ref, k_ref, v_ref, o_ref, q_sc, m_sc, l_sc, acc_sc,
                       *, num_heads, head_dim):
    # q_ref: (tq, H, hd)  k_ref/v_ref: (tkv, H, hd)  o_ref: (tq, H*hd)  (all bf16)
    ki = pl.program_id(2)

    @pl.when(ki == 0)
    def _():
        m_sc[...] = jnp.full_like(m_sc, -jnp.inf)
        l_sc[...] = jnp.zeros_like(l_sc)
        acc_sc[...] = jnp.zeros_like(acc_sc)
        # Hoist per-head q slices: one relayout per q-tile instead of per kv step.
        # (Softmax scale was folded into W_qkv's q columns, so no rescale here.)
        for h in range(num_heads):
            q_sc[h] = q_ref[:, h, :]

    for h in range(num_heads):                 # static unroll; H is small
        q = q_sc[h]                            # (tq, hd) bf16
        k = k_ref[:, h, :]                     # (tkv, hd) bf16
        v = v_ref[:, h, :]                     # (tkv, hd) bf16

        # q @ k^T on the MXU in bf16, f32 accumulation; no materialized k.T.
        s = lax.dot_general(q, k, (((1,), (1,)), ((), ())),
                            preferred_element_type=jnp.float32)   # (tq, tkv) f32

        m_prev = m_sc[h]                                           # (tq, 1) f32
        m_new = jnp.maximum(m_prev, jnp.max(s, axis=-1, keepdims=True))
        alpha = jnp.exp(m_prev - m_new)
        p = jnp.exp(s - m_new)                                     # f32 softmax math

        l_sc[h] = alpha * l_sc[h] + jnp.sum(p, axis=-1, keepdims=True)
        acc_sc[h] = alpha * acc_sc[h] + lax.dot_general(
            p.astype(jnp.bfloat16), v, (((1,), (0,)), ((), ())),
            preferred_element_type=jnp.float32)                    # (tq, hd) f32
        m_sc[h] = m_new

    @pl.when(ki == pl.num_programs(2) - 1)
    def _():
        # TODO(synk): attn_drop / proj_drop are identity (drop ratio 0.0); dropout omitted.
        for h in range(num_heads):
            inv_l = pl.reciprocal(l_sc[h], approx=True)            # EUP slot
            o_ref[:, h * head_dim:(h + 1) * head_dim] = (
                acc_sc[h] * inv_l).astype(o_ref.dtype)


def flash_attention(qkv5):
    """qkv5: (B, N, 3, H, hd) (scale already folded into q). Returns (B, N, H*hd)."""
    B, N, _, H, hd = qkv5.shape
    C = H * hd
    tq = _pick_tile(N, (512, 256, 128))
    tkv = _pick_tile(N, (256, 128))
    grid = (B, N // tq, N // tkv)

    # Guard the full-dim fallback: double-buffered q/k/v + out blocks plus scratch
    # must stay well inside the default scoped-VMEM budget (v7x: 64 MiB total VMEM).
    itm = jnp.dtype(qkv5.dtype).itemsize
    est_bytes = (2 * (tq + 2 * tkv) * C * itm    # double-buffered q/k/v blocks
                 + 2 * tq * C * itm              # double-buffered out block
                 + tq * C * (itm + 4)            # q scratch (bf16) + acc scratch (f32)
                 + 8 * tq * H * 4)               # m/l scratch
    assert est_bytes < 24 * 1024 * 1024, (
        f"flash_attention tiles need ~{est_bytes/2**20:.1f} MiB VMEM; "
        f"shrink tq/tkv (N={N}, C={C}).")

    q_spec = pl.BlockSpec((None, tq, None, H, hd),
                          lambda b, qi, ki: (b, qi, 0, 0, 0))
    k_spec = pl.BlockSpec((None, tkv, None, H, hd),
                          lambda b, qi, ki: (b, ki, 1, 0, 0))
    v_spec = pl.BlockSpec((None, tkv, None, H, hd),
                          lambda b, qi, ki: (b, ki, 2, 0, 0))
    # Lane-dense output: last block dim is C (multiple of 128 for real ViT dims).
    o_spec = pl.BlockSpec((None, tq, C), lambda b, qi, ki: (b, qi, 0))

    return pl.pallas_call(
        functools.partial(_flash_attn_kernel, num_heads=H, head_dim=hd),
        out_shape=jax.ShapeDtypeStruct((B, N, C), qkv5.dtype),
        grid=grid,
        in_specs=[q_spec, k_spec, v_spec],
        out_specs=o_spec,
        scratch_shapes=[pltpu.VMEM((H, tq, hd), qkv5.dtype),   # q (pre-scaled via W)
                        pltpu.VMEM((H, tq, 1), jnp.float32),   # m
                        pltpu.VMEM((H, tq, 1), jnp.float32),   # l
                        pltpu.VMEM((H, tq, hd), jnp.float32)], # acc
        compiler_params=pltpu.CompilerParams(
            dimension_semantics=("parallel", "parallel", "arbitrary")),
    )(qkv5, qkv5, qkv5)


# ---------------------------------------------------------------------------
# Full Attention.forward
# ---------------------------------------------------------------------------
def attention_forward(x, params, num_heads):
    B, N, C = x.shape
    assert C % num_heads == 0
    hd = C // num_heads
    scale = hd ** (-0.5)

    # Fold the softmax scale into the q columns of W_qkv (one-time XLA op):
    # (q @ k^T) * scale == (x @ (Wq * scale)) @ k^T.
    qkv_w = params["qkv_w"]
    qkv_w = jnp.concatenate([qkv_w[:, :C] * scale, qkv_w[:, C:]], axis=1)

    # bf16 MXU operands / HBM intermediates; f32 accumulation inside the kernels.
    x2d = x.reshape(B * N, C).astype(jnp.bfloat16)

    # qkv = nn.Linear(dim, dim*3, bias=False)  -> bias-free tiled matmul
    qkv = linear(x2d, qkv_w.astype(jnp.bfloat16), out_dtype=jnp.bfloat16)  # (B*N, 3C)
    qkv5 = qkv.reshape(B, N, 3, num_heads, hd)          # trailing-dim split: free

    out = flash_attention(qkv5)                          # (B, N, C) bf16, lane-dense
    out2d = out.reshape(B * N, C)                        # trailing-dim merge: free

    # proj = nn.Linear(dim, dim) with bias; final output back in x.dtype.
    out2d = linear(out2d, params["proj_w"].astype(jnp.bfloat16),
                   params["proj_b"], out_dtype=x.dtype)
    return out2d.reshape(B, N, C)


def attention_reference(x, params, num_heads):
    B, N, C = x.shape
    hd = C // num_heads
    scale = hd ** (-0.5)
    qkv = x @ params["qkv_w"]                            # qkv_bias=False
    qkv = qkv.reshape(B, N, 3, num_heads, hd).transpose(2, 0, 3, 1, 4)
    q, k, v = qkv[0], qkv[1], qkv[2]
    attn = jax.nn.softmax(jnp.einsum("bhqd,bhkd->bhqk", q, k) * scale, axis=-1)
    out = jnp.einsum("bhqk,bhkd->bhqd", attn, v)
    out = out.transpose(0, 2, 1, 3).reshape(B, N, C)
    return out @ params["proj_w"] + params["proj_b"]


if __name__ == "__main__":
    B, N, C = 2, 8, 32
    num_heads = 4

    key = jax.random.PRNGKey(0)
    kx, kqkv, kpw, kpb = jax.random.split(key, 4)

    x = jax.random.normal(kx, (B, N, C), dtype=jnp.float32)

    params = {
        # nn.Linear(dim, dim*3, bias=False): stored as (C, 3C)
        "qkv_w": (jax.random.normal(kqkv, (C, 3 * C), dtype=jnp.float32)
                  * (1.0 / jnp.sqrt(C))),
        # nn.Linear(dim, dim): stored as (C, C), bias (C,)
        "proj_w": (jax.random.normal(kpw, (C, C), dtype=jnp.float32)
                   * (1.0 / jnp.sqrt(C))),
        "proj_b": jax.random.normal(kpb, (C,), dtype=jnp.float32) * 0.01,
    }

    out = attention_forward(x, params, num_heads)
    out = jax.block_until_ready(out)

    ref = attention_reference(x, params, num_heads)
    assert out.shape == (B, N, C)
    max_err = float(jnp.max(jnp.abs(out.astype(jnp.float32) - ref)))
    # Tolerance accounts for bf16 MXU operands / bf16 HBM intermediates
    # (f32 accumulation) and the approximate EUP reciprocal in the softmax.
    assert jnp.allclose(out.astype(jnp.float32), ref, atol=1e-1, rtol=1e-1), (
        f"max abs err = {max_err}")

    print("KERNEL_OK")
</pallas_src>

<mosaic_0001>
module attributes {stable_mosaic.version = 11 : i64} {
  func.func @_matmul_kernel(%arg0: i32, %arg1: i32, %arg2: i32, %arg3: memref<16x32xbf16, #tpu.memory_space<vmem>>, %arg4: memref<32x96xbf16, #tpu.memory_space<vmem>>, %arg5: memref<16x96xbf16, #tpu.memory_space<vmem>>, %arg6: memref<16x96xf32, #tpu.memory_space<vmem>>) attributes {dimension_semantics = [#tpu.dimension_semantics<parallel>, #tpu.dimension_semantics<parallel>, #tpu.dimension_semantics<arbitrary>], iteration_bounds = array<i64: 1, 1, 1>, scalar_prefetch = 0 : i64, scratch_operands = 1 : i64, tpu.core_type = #tpu.core_type<tc>, window_params = [{transform_indices = @transform_0, window_bounds = array<i64: 16, 32>}, {transform_indices = @transform_1, window_bounds = array<i64: 32, 96>}, {transform_indices = @transform_2, window_bounds = array<i64: 16, 96>}]} {
    %c0_i32 = arith.constant 0 : i32
    %0 = arith.cmpi eq, %arg2, %c0_i32 : i32
    %1 = arith.extui %0 : i1 to i32
    %c0_i32_0 = arith.constant 0 : i32
    %2 = arith.cmpi ne, %1, %c0_i32_0 : i32
    scf.if %2 {
      %cst_10 = arith.constant 0.000000e+00 : f32
      %12 = vector.broadcast %cst_10 : f32 to vector<16x96xf32>
      %c0_11 = arith.constant 0 : index
      %c0_12 = arith.constant 0 : index
      %13 = vector.load %arg6[%c0_11, %c0_12] : memref<16x96xf32, #tpu.memory_space<vmem>>, vector<16x96xf32>
      tpu.vector_store %arg6[%c0_11, %c0_12], %12 {strides = array<i32>} : memref<16x96xf32, #tpu.memory_space<vmem>>, vector<16x96xf32>,
    } else {
    }
    %c0 = arith.constant 0 : index
    %c0_1 = arith.constant 0 : index
    %3 = vector.load %arg6[%c0, %c0_1] : memref<16x96xf32, #tpu.memory_space<vmem>>, vector<16x96xf32>
    %c0_2 = arith.constant 0 : index
    %c0_3 = arith.constant 0 : index
    %4 = vector.load %arg3[%c0_2, %c0_3] : memref<16x32xbf16, #tpu.memory_space<vmem>>, vector<16x32xbf16>
    %c0_4 = arith.constant 0 : index
    %c0_5 = arith.constant 0 : index
    %5 = vector.load %arg4[%c0_4, %c0_5] : memref<32x96xbf16, #tpu.memory_space<vmem>>, vector<32x96xbf16>
    %cst = arith.constant dense<0.000000e+00> : vector<16x96xf32>
    %6 = tpu.matmul %4, %5, %cst {dimension_numbers = #tpu.dot_dimension_numbers<[1], [0], [0], [1], [0, 0, 1, 1], [], []>} : vector<16x32xbf16>, vector<32x96xbf16>, vector<16x96xf32> -> vector<16x96xf32>
    %7 = arith.addf %3, %6 : vector<16x96xf32>
    %c0_6 = arith.constant 0 : index
    %c0_7 = arith.constant 0 : index
    %8 = vector.load %arg6[%c0_6, %c0_7] : memref<16x96xf32, #tpu.memory_space<vmem>>, vector<16x96xf32>
    tpu.vector_store %arg6[%c0_6, %c0_7], %7 {strides = array<i32>} : memref<16x96xf32, #tpu.memory_space<vmem>>, vector<16x96xf32>,
    %c0_i32_8 = arith.constant 0 : i32
    %9 = arith.cmpi eq, %arg2, %c0_i32_8 : i32
    %10 = arith.extui %9 : i1 to i32
    %c0_i32_9 = arith.constant 0 : i32
    %11 = arith.cmpi ne, %10, %c0_i32_9 : i32
    scf.if %11 {
      %c0_10 = arith.constant 0 : index
      %c0_11 = arith.constant 0 : index
      %12 = vector.load %arg6[%c0_10, %c0_11] : memref<16x96xf32, #tpu.memory_space<vmem>>, vector<16x96xf32>
      %13 = arith.truncf %12 : vector<16x96xf32> to vector<16x96xbf16>
      %c0_12 = arith.constant 0 : index
      %c0_13 = arith.constant 0 : index
      %14 = vector.load %arg5[%c0_12, %c0_13] : memref<16x96xbf16, #tpu.memory_space<vmem>>, vector<16x96xbf16>
      tpu.vector_store %arg5[%c0_12, %c0_13], %13 {strides = array<i32>} : memref<16x96xbf16, #tpu.memory_space<vmem>>, vector<16x96xbf16>,
    } else {
    }
    return
  }
  func.func @transform_0(%arg0: i32, %arg1: i32, %arg2: i32) -> (i32, i32) {
    %c0_i32 = arith.constant 0 : i32
    return %arg0, %arg2 : i32, i32
  }
  func.func @transform_1(%arg0: i32, %arg1: i32, %arg2: i32) -> (i32, i32) {
    %c0_i32 = arith.constant 0 : i32
    return %arg2, %arg1 : i32, i32
  }
  func.func @transform_2(%arg0: i32, %arg1: i32, %arg2: i32) -> (i32, i32) {
    %c0_i32 = arith.constant 0 : i32
    return %arg0, %arg1 : i32, i32
  }
}

</mosaic_0001>

<llo_original>
// kernel: tpu_custom_call.1
$region0: #{tpu_custom_call.1}
  #allocation0 [shape = 'u32[]', space=smem, size = 0x4, offset = 0x4, fixed_abs, tag = 'smem constant byte address 0x4 - core index']
  #allocation1 [shape = 'u32[144,128]{1,0:T(1,128)}', space=vmem, size = 0x12000, scoped, tag = 'internal scratch']
  #allocation2 [shape = 'f32[16,96]{1,0:T(8,128)}', space=vmem, size = 0x2000, scoped, tag = 'scratch operand']
  %s0 = inlined_call_operand.hbm [shape: bf16[16,32], index: 0, kind: input, shape index: {}]
  %s1 = inlined_call_operand.hbm [shape: bf16[32,96], index: 1, kind: input, shape index: {}]
  %s2 = inlined_call_operand.hbm [shape: bf16[16,96], index: 2, kind: output, shape index: {}]
  %s3 = sld [smem:[#allocation0]]
  $region34: #{tpu_custom_call.1} parent=0
    _
  %s5 = ssub.s32 1, %s3
  %s6 = scalar_select 0, %s5, %s3
  $region1: #{tpu_custom_call.1} parent=0
    #allocation3 [shape = 'u8[4096]{0}', space=vmem, size = 0x1000, scoped, tag = 'input window, operand 0, single buffered']
    #allocation4 [shape = 's32[1]{0}', space=sflag, size = 0x4, scoped, tag = 'scoped memory for tpu_custom_call.1']
    #allocation5 [shape = 's32[1]{0}', space=sflag, size = 0x4, scoped, tag = 'scoped memory for tpu_custom_call.1']
    #allocation6 [shape = 'u8[8192]{0}', space=vmem, size = 0x2000, scoped, tag = 'input window, operand 1, single buffered']
    #allocation7 [shape = 's32[1]{0}', space=sflag, size = 0x4, scoped, tag = 'scoped memory for tpu_custom_call.1']
    #allocation8 [shape = 'u8[4096]{0}', space=vmem, size = 0x1000, scoped, tag = 'output window, operand 0, single buffered']
    %7 = vsyncpa [#allocation4], 0
    %8 = vsyncpa [#allocation7], 0
    %9 = vsyncpa [#allocation5], 0
    // Predicated region
    $region2: #{tpu_custom_call.1} parent=1 // pred_check
      _
    $region3: #{tpu_custom_call.1} parent=1 // pred_check_branch
      %11 = sbr.rel (0) target = $region5
    $region4: #{tpu_custom_call.1} parent=1 // pred_region
      %s13 = ssub.s32 128, 128
      %14 = vsyncadd [#allocation4], %s13
      %s15 = sshll.u32 [#allocation3], 4
      %s16 = int_to_ptr.vmem [resolvable:$true] %s15
      %21 = dma.hbm_to_vmem [thread:$0]  %s0, 128, %s16, [#allocation4], 64, 64, 4
    $region5: #{tpu_custom_call.1} parent=1 // pred_fallthru
      _
    // Predicated region
    $region6: #{tpu_custom_call.1} parent=1 // pred_check
      _
    $region7: #{tpu_custom_call.1} parent=1 // pred_check_branch
      %23 = sbr.rel (0) target = $region9
    $region8: #{tpu_custom_call.1} parent=1 // pred_region
      %s25 = ssub.s32 256, 256
      %26 = vsyncadd [#allocation7], %s25
      %s27 = sshll.u32 [#allocation6], 4
      %s28 = int_to_ptr.vmem [resolvable:$true] %s27
      %33 = dma.hbm_to_vmem [thread:$0]  %s1, 256, %s28, [#allocation7], 64, 64, 4
    $region9: #{tpu_custom_call.1} parent=1 // pred_fallthru
      _
    // Predicated region
    $region10: #{tpu_custom_call.1} parent=1 // pred_check
      _
    $region11: #{tpu_custom_call.1} parent=1 // pred_check_branch
      %35 = sbr.rel (0) target = $region13
    $region12: #{tpu_custom_call.1} parent=1 // pred_region
      %36 = dma.done [#allocation4], 128
    $region13: #{tpu_custom_call.1} parent=1 // pred_fallthru
      _
    // Predicated region
    $region14: #{tpu_custom_call.1} parent=1 // pred_check
      _
    $region15: #{tpu_custom_call.1} parent=1 // pred_check_branch
      %38 = sbr.rel (0) target = $region17
    $region16: #{tpu_custom_call.1} parent=1 // pred_region
      %39 = dma.done [#allocation7], 256
    $region17: #{tpu_custom_call.1} parent=1 // pred_fallthru
      _
    %p41 = scmp.eq.s32.totalorder 0, 0
    // Predicated region
    $region18: #{tpu_custom_call.1} parent=1 // pred_check
      %p42 = pneg %p41
    $region19: #{tpu_custom_call.1} parent=1 // pred_check_branch
      %44 = sbr.rel (%p42) target = $region21
    $region20: #{tpu_custom_call.1} parent=1 // pred_region
      %vm45 = vcmask 785408
      %46 = vst.msk [vmem:[#allocation2] sm:$0xff] %vm45, 0.0
      %47 = vst.msk [vmem:[#allocation2 + $0x8] sm:$0xff] %vm45, 0.0
    $region21: #{tpu_custom_call.1} parent=1 // pred_fallthru
      _
    %v48 = vld [vmem:[#allocation2] sm:$0xff]
    %v49 = vld [vmem:[#allocation2 + $0x8] sm:$0xff]
    %v50 = vld [vmem:[#allocation3] sm:$0xf]
    %v51 = vld [vmem:[#allocation3 + $0x4] sm:$0xf]
    %v52 = vld [vmem:[#allocation6] sm:$0xf]
    %v53 = vld [vmem:[#allocation6 + $0x4] sm:$0xf]
    %v54 = vld [vmem:[#allocation6 + $0x8] sm:$0xf]
    %v55 = vld [vmem:[#allocation6 + $0xc] sm:$0xf]
    %v58 = vunpack.c.l.b16 %v50
    %v59 = vunpack.c.l.b16 %v51
    %v60 = vpack.c.b16 %v59, %v58
    %v65 = vunpack.c.l.b16 %v52
    %v66 = vunpack.c.l.b16 %v53
    %v67 = vunpack.c.l.b16 %v54
    %v68 = vunpack.c.l.b16 %v55
    %v69 = vpack.c.b16 %v66, %v65
    %v70 = vpack.c.b16 %v68, %v67
    %vm73 = vcmask 261120
    %v75 = vsel %vm73, %v60, 0
    %77 = vmatprep.subr.bf16.mxu0 0
    %78 = vmatpush1.bf16.msra.mxu0 0
    %79 = vmatprep.subr.bf16.mxu0 0
    %80 = vmatpush1.bf16.msra.mxu0 0
    %81 = vmatprep.subr.bf16.mxu0 0
    %82 = vmatpush1.bf16.msra.mxu0 0
    %83 = vmatprep.subr.bf16.mxu0 0
    %84 = vmatpush1.bf16.msra.mxu0 0
    %85 = vmatprep.subr.bf16.mxu0 0
    %86 = vmatpush1.bf16.msra.mxu0 0
    %87 = vmatprep.subr.bf16.mxu0 0
    %88 = vmatpush1.bf16.msra.mxu0 0
    %89 = vmatprep.subr.bf16.mxu0 0
    %90 = vmatpush1.bf16.msra.mxu0 %v70
    %91 = vmatprep.subr.bf16.mxu0 0
    %92 = vmatpush1.bf16.msra.mxu0 %v69
    %93 = vmatprep.subr.bf16.mxu0 0
    %94 = vmatpush2.bf16.msra.mxu0 0
    %95 = vmatprep.subr.bf16.mxu0 0
    %96 = vmatpush2.bf16.msra.mxu0 0
    %97 = vmatprep.subr.bf16.mxu0 0
    %98 = vmatpush2.bf16.msra.mxu0 0
    %99 = vmatprep.subr.bf16.mxu0 0
    %100 = vmatpush2.bf16.msra.mxu0 0
    %101 = vmatprep.subr.bf16.mxu0 0
    %102 = vmatpush2.bf16.msra.mxu0 0
    %103 = vmatprep.subr.bf16.mxu0 0
    %104 = vmatpush2.bf16.msra.mxu0 0
    %105 = vmatprep.subr.bf16.mxu0 0
    %106 = vmatpush2.bf16.msra.mxu0 0
    %107 = vmatprep.subr.bf16.mxu0 0
    %108 = vmatpush2.bf16.msra.mxu0 0
    %109 = vmatprep.mubr.bf16.mxu0 0
    %110 = vmatmul.mubr.bf16.gmra.mxu0 %v75
    %v111 = vpop.f32.mrf.mxu0
    %v112 = vadd.f32 0.0, %v111
    %v113 = vpop.f32.mrf.mxu0
    %v114 = vpop.f32.mrf.mxu0
    %v115 = vadd.f32 0.0, %v114
    %v116 = vpop.f32.mrf.mxu0
    %117 = vdwg.mxu0
    %v118 = vadd.f32 %v48, %v112
    %v119 = vadd.f32 %v49, %v115
    %vm120 = vcmask 785408
    %121 = vst.msk [vmem:[#allocation2] sm:$0xff] %vm120, %v118
    %122 = vst.msk [vmem:[#allocation2 + $0x8] sm:$0xff] %vm120, %v119
    // Predicated region
    $region22: #{tpu_custom_call.1} parent=1 // pred_check
      %p123 = pneg %p41
    $region23: #{tpu_custom_call.1} parent=1 // pred_check_branch
      %125 = sbr.rel (%p123) target = $region25
    $region24: #{tpu_custom_call.1} parent=1 // pred_region
      %v126 = vld [vmem:[#allocation2] sm:$0xff]
      %v127 = vld [vmem:[#allocation2 + $0x8] sm:$0xff]
      %v128 = vpack.c.bf16 %v127, %v126
      %v130 = vunpack.c.l.b16 %v128
      %v131 = vunpack.c.h.b16 %v128
      %v132 = vpack.c.b16 %v130, %v130
      %v133 = vpack.c.b16 %v131, %v131
      %vm136 = vcmask 781312
      %137 = vst.msk [vmem:[#allocation8] sm:$0xf] %vm136, %v132
      %138 = vst.msk [vmem:[#allocation8 + $0x4] sm:$0xf] %vm136, %v133
    $region25: #{tpu_custom_call.1} parent=1 // pred_fallthru
      _
    // Predicated region
    $region26: #{tpu_custom_call.1} parent=1 // pred_check
      _
    $region27: #{tpu_custom_call.1} parent=1 // pred_check_branch
      %140 = sbr.rel (0) target = $region29
    $region28: #{tpu_custom_call.1} parent=1 // pred_region
      %s142 = ssub.s32 128, 128
      %143 = vsyncadd [#allocation5], %s142
      %s144 = sshll.u32 [#allocation8], 4
      %s145 = int_to_ptr.vmem [resolvable:$true] %s144
      %150 = dma.vmem_to_hbm [thread:$0]  %s145, 128, %s2, [#allocation5], 64, 64, 4
    $region29: #{tpu_custom_call.1} parent=1 // pred_fallthru
      _
    // Predicated region
    $region30: #{tpu_custom_call.1} parent=1 // pred_check
      _
    $region31: #{tpu_custom_call.1} parent=1 // pred_check_branch
      %152 = sbr.rel (0) target = $region33
    $region32: #{tpu_custom_call.1} parent=1 // pred_region
      %153 = dma.done [#allocation5], 128
    $region33: #{tpu_custom_call.1} parent=1 // pred_fallthru
      _
    %154 = vsyncpa [#allocation4], 1
    %155 = vsyncpa [#allocation7], 1
    %156 = vsyncpa [#allocation5], 1

</llo_original>
